<compile_context>
chip_gen: v5e
topology: v5e:2x2
jax: 0.10.0
libtpu: 0.0.40
codegen_flags: <defaults>
</compile_context>

<pallas_src>
import jax
import jax.numpy as jnp
from jax.experimental import pallas as pl
from jax.experimental.pallas import tpu as pltpu


def _round_up(x: int, m: int) -> int:
    return ((x + m - 1) // m) * m


def vdn_kernel(q_ref, o_ref):
    # q_ref: [N_agents, TB] VMEM tile (agents on sublanes, batch on lanes).
    # o_ref: [1, TB]        VMEM tile (lane-dense output).
    n_agents = q_ref.shape[0]  # static
    acc_dtype = jnp.float32 if jnp.issubdtype(q_ref.dtype, jnp.inexact) else jnp.int32
    # Unrolled row adds on the VPU; accumulate at higher precision.
    acc = q_ref[0:1, :].astype(acc_dtype)
    for i in range(1, n_agents):
        acc = acc + q_ref[i : i + 1, :].astype(acc_dtype)
    o_ref[...] = acc.astype(o_ref.dtype)


def _vdn_forward_pallas(q_local: jax.Array) -> jax.Array:
    B, N = q_local.shape
    dtype = q_local.dtype
    itemsize = jnp.dtype(dtype).itemsize

    # Layout plumbing: agents -> sublanes, batch -> lanes.
    q_t = q_local.T  # [N, B]

    # Largest lane tile (multiple of 128) whose double-buffered input block
    # plus output block stays inside a conservative 8 MiB working budget
    # (safe on v5e/v6e 128 MiB VMEM and v7x 64 MiB / 32 MiB scoped default).
    # The kernel is HBM-bandwidth-bound, so 32768 lanes already saturates it.
    vmem_budget_bytes = 8 * 1024 * 1024
    max_tb = vmem_budget_bytes // (2 * (N + 1) * itemsize)
    max_tb = max(128, (max_tb // 128) * 128)
    tb = min(_round_up(B, 128), max_tb, 32768)

    b_pad = _round_up(B, tb)
    if b_pad != B:
        # Zero-pad extra batch columns; they are sliced off afterwards.
        q_t = jnp.pad(q_t, ((0, 0), (0, b_pad - B)))

    grid = (b_pad // tb,)
    out = pl.pallas_call(
        vdn_kernel,
        out_shape=jax.ShapeDtypeStruct((1, b_pad), dtype),
        grid=grid,
        in_specs=[pl.BlockSpec((N, tb), lambda i: (0, i))],
        out_specs=pl.BlockSpec((1, tb), lambda i: (0, i)),
        compiler_params=pltpu.CompilerParams(
            dimension_semantics=("parallel",),
        ),
    )(q_t)
    return out[0, :B]


def vdn_forward(q_local: jax.Array, *, min_pallas_batch: int = 64) -> jax.Array:
    """Pallas implementation of VDN.forward: sum over dim=1.

    q_local: [B, N] array.  Returns a [B] array of the same dtype.
    For tiny batches the Pallas launch cost dwarfs the work, so we fall back
    to a plain jnp.sum that XLA fuses into the surrounding graph.
    """
    B, _ = q_local.shape
    if B < min_pallas_batch:
        return jnp.sum(q_local, axis=1)
    return _vdn_forward_pallas(q_local)


if __name__ == "__main__":
    key = jax.random.PRNGKey(0)
    k1, k2 = jax.random.split(key)

    # Tiny case matching the module's typical use (batch=2, n_agents=4):
    # dispatches to the fused-XLA fallback path.
    q_small = jax.random.normal(k1, (2, 4), dtype=jnp.float32)
    out_small = vdn_forward(q_small)
    jax.block_until_ready(out_small)
    ref_small = jnp.sum(q_small, axis=1)
    assert out_small.shape == ref_small.shape == (2,)
    assert jnp.allclose(out_small, ref_small, atol=1e-6, rtol=1e-6)

    # Moderately sized case (batch=300, n_agents=4): exercises the Pallas
    # kernel path, including lane padding (300 -> 384) and result slicing.
    q_big = jax.random.normal(k2, (300, 4), dtype=jnp.float32)
    out_big = vdn_forward(q_big)
    jax.block_until_ready(out_big)
    ref_big = jnp.sum(q_big, axis=1)
    assert out_big.shape == ref_big.shape == (300,)
    assert jnp.allclose(out_big, ref_big, atol=1e-5, rtol=1e-5)

    print("KERNEL_OK")
</pallas_src>

<mosaic_0001>
module attributes {stable_mosaic.version = 11 : i64} {
  func.func @vdn_kernel(%arg0: i32, %arg1: memref<4x384xf32, #tpu.memory_space<vmem>>, %arg2: memref<1x384xf32, #tpu.memory_space<vmem>>) attributes {dimension_semantics = [#tpu.dimension_semantics<parallel>], iteration_bounds = array<i64: 1>, scalar_prefetch = 0 : i64, scratch_operands = 0 : i64, tpu.core_type = #tpu.core_type<tc>, window_params = [{transform_indices = @transform_0, window_bounds = array<i64: 4, 384>}, {transform_indices = @transform_1, window_bounds = array<i64: 1, 384>}]} {
    %c0 = arith.constant 0 : index
    %c0_0 = arith.constant 0 : index
    %0 = vector.load %arg1[%c0, %c0_0] : memref<4x384xf32, #tpu.memory_space<vmem>>, vector<1x384xf32>
    %c1 = arith.constant 1 : index
    %c0_1 = arith.constant 0 : index
    %1 = vector.load %arg1[%c1, %c0_1] : memref<4x384xf32, #tpu.memory_space<vmem>>, vector<1x384xf32>
    %2 = arith.addf %0, %1 : vector<1x384xf32>
    %c2 = arith.constant 2 : index
    %c0_2 = arith.constant 0 : index
    %3 = vector.load %arg1[%c2, %c0_2] : memref<4x384xf32, #tpu.memory_space<vmem>>, vector<1x384xf32>
    %4 = arith.addf %2, %3 : vector<1x384xf32>
    %c3 = arith.constant 3 : index
    %c0_3 = arith.constant 0 : index
    %5 = vector.load %arg1[%c3, %c0_3] : memref<4x384xf32, #tpu.memory_space<vmem>>, vector<1x384xf32>
    %6 = arith.addf %4, %5 : vector<1x384xf32>
    %c0_4 = arith.constant 0 : index
    %c0_5 = arith.constant 0 : index
    %7 = vector.load %arg2[%c0_4, %c0_5] : memref<1x384xf32, #tpu.memory_space<vmem>>, vector<1x384xf32>
    tpu.vector_store %arg2[%c0_4, %c0_5], %6 {strides = array<i32>} : memref<1x384xf32, #tpu.memory_space<vmem>>, vector<1x384xf32>,
    return
  }
  func.func @transform_0(%arg0: i32) -> (i32, i32) {
    %c0_i32 = arith.constant 0 : i32
    %c0_i32_0 = arith.constant 0 : i32
    return %c0_i32, %arg0 : i32, i32
  }
  func.func @transform_1(%arg0: i32) -> (i32, i32) {
    %c0_i32 = arith.constant 0 : i32
    %c0_i32_0 = arith.constant 0 : i32
    return %c0_i32, %arg0 : i32, i32
  }
}

</mosaic_0001>

<llo_original>
// kernel: tpu_custom_call.1
$region0: #{tpu_custom_call.1}
  #allocation0 [shape = 'u32[]', space=smem, size = 0x4, offset = 0x4, fixed_abs, tag = 'smem constant byte address 0x4 - core index']
  #allocation1 [shape = 'u32[72,128]{1,0:T(1,128)}', space=vmem, size = 0x9000, scoped, tag = 'internal scratch']
  %s0 = inlined_call_operand.hbm [shape: f32[4,384], index: 0, kind: input, shape index: {}]
  %s1 = inlined_call_operand.hbm [shape: f32[1,384], index: 1, kind: output, shape index: {}]
  %s2 = sld [smem:[#allocation0]]
  $region18: #{tpu_custom_call.1} parent=0
    _
  %s4 = ssub.s32 1, %s2
  %s5 = scalar_select 0, %s4, %s2
  $region1: #{tpu_custom_call.1} parent=0
    #allocation2 [shape = 'u8[6144]{0}', space=vmem, size = 0x1800, scoped, tag = 'input window, operand 0, single buffered']
    #allocation3 [shape = 's32[1]{0}', space=sflag, size = 0x4, scoped, tag = 'scoped memory for tpu_custom_call.1']
    #allocation4 [shape = 's32[1]{0}', space=sflag, size = 0x4, scoped, tag = 'scoped memory for tpu_custom_call.1']
    #allocation5 [shape = 'u8[1536]{0}', space=vmem, size = 0x800, scoped, tag = 'output window, operand 0, single buffered']
    %6 = vsyncpa [#allocation3], 0
    %7 = vsyncpa [#allocation4], 0
    // Predicated region
    $region2: #{tpu_custom_call.1} parent=1 // pred_check
      _
    $region3: #{tpu_custom_call.1} parent=1 // pred_check_branch
      %9 = sbr.rel (0) target = $region5
    $region4: #{tpu_custom_call.1} parent=1 // pred_region
      %11 = vsyncadd [#allocation3], 0
      %s13 = sshll.u32 %s0, 4
      %s14 = int_to_ptr.hbm [resolvable:$true] %s13
      %s15 = sshll.u32 [#allocation2], 4
      %s16 = int_to_ptr.vmem [resolvable:$true] %s15
      %18 = dma.hbm_to_vmem [thread:$0]  %s14, 192, %s16, [#allocation3]
    $region5: #{tpu_custom_call.1} parent=1 // pred_fallthru
      _
    // Predicated region
    $region6: #{tpu_custom_call.1} parent=1 // pred_check
      _
    $region7: #{tpu_custom_call.1} parent=1 // pred_check_branch
      %20 = sbr.rel (0) target = $region9
    $region8: #{tpu_custom_call.1} parent=1 // pred_region
      %22 = dma.done [#allocation3], 192
    $region9: #{tpu_custom_call.1} parent=1 // pred_fallthru
      _
    %v23 = vld [vmem:[#allocation2] ss:$4 sm:$0x7]
    %s24 = scalar_lea.vmem [#allocation2], 1
    %v25 = vld [vmem:[%s24] ss:$4 sm:$0x7]
    %v26 = vadd.f32 %v23, %v25
    %s27 = scalar_lea.vmem [#allocation2], 2
    %v28 = vld [vmem:[%s27] ss:$4 sm:$0x7]
    %v29 = vadd.f32 %v26, %v28
    %s30 = scalar_lea.vmem [#allocation2], 3
    %v31 = vld [vmem:[%s30] ss:$4 sm:$0x7]
    %v32 = vadd.f32 %v29, %v31
    %v33 = vlaneseq
    %vm34 = vcmp.ge.s32.totalorder %v33, 0
    %vm35 = vcmp.lt.s32.totalorder %v33, 384
    %vm36 = vmand %vm34, %vm35
    %37 = vst.msk [vmem:[#allocation5] sm:$0x7] %vm36, %v32
    // Predicated region
    $region10: #{tpu_custom_call.1} parent=1 // pred_check
      _
    $region11: #{tpu_custom_call.1} parent=1 // pred_check_branch
      %39 = sbr.rel (0) target = $region13
    $region12: #{tpu_custom_call.1} parent=1 // pred_region
      %41 = vsyncadd [#allocation4], 0
      %s43 = sshll.u32 [#allocation5], 4
      %s44 = int_to_ptr.vmem [resolvable:$true] %s43
      %s45 = sshll.u32 %s1, 4
      %s46 = int_to_ptr.hbm [resolvable:$true] %s45
      %48 = dma.vmem_to_hbm [thread:$0]  %s44, 48, %s46, [#allocation4]
    $region13: #{tpu_custom_call.1} parent=1 // pred_fallthru
      _
    // Predicated region
    $region14: #{tpu_custom_call.1} parent=1 // pred_check
      _
    $region15: #{tpu_custom_call.1} parent=1 // pred_check_branch
      %50 = sbr.rel (0) target = $region17
    $region16: #{tpu_custom_call.1} parent=1 // pred_region
      %52 = dma.done [#allocation4], 48
    $region17: #{tpu_custom_call.1} parent=1 // pred_fallthru
      _
    %53 = vsyncpa [#allocation3], 1
    %54 = vsyncpa [#allocation4], 1

</llo_original>
